<compile_context>
chip_gen: v7x
topology: tpu7x:2x2x1
jax: 0.10.0
libtpu: 0.0.40
codegen_flags: <defaults>
</compile_context>

<pallas_src>
import jax
import jax.numpy as jnp
from jax import lax
from jax.experimental import pallas as pl
from jax.experimental.pallas import tpu as pltpu


def foolsgold_kernel(x_ref, o_ref):
    x = x_ref[...].astype(jnp.float32)                        # (n, d), one vreg
    n = x.shape[0]

    # --- cosine similarity (sklearn cosine_similarity) minus identity ---
    norm_sq = jnp.sum(x * x, axis=1, keepdims=True)           # (n, 1)
    inv_norm = jnp.where(norm_sq > 0.0, lax.rsqrt(norm_sq), 0.0)  # zero-norm guard
    xn = x * inv_norm
    row = lax.broadcasted_iota(jnp.int32, (n, n), 0)
    col = lax.broadcasted_iota(jnp.int32, (n, n), 1)
    eye = (row == col).astype(jnp.float32)
    # NT contraction: contract last dim of both operands -> no explicit xn.T.
    cs = lax.dot_general(
        xn, xn, dimension_numbers=(((1,), (1,)), ((), ())),
        preferred_element_type=jnp.float32) - eye             # (n, n)

    # --- pardoning: cs[i,j] *= maxcs[i]/maxcs[j] where maxcs[i] < maxcs[j] ---
    maxcs_row = jnp.max(cs, axis=1, keepdims=True)            # (n, 1)
    maxcs_col = jnp.max(cs, axis=0, keepdims=True)            # (1, n): cs symmetric here
    ratio = maxcs_row * pl.reciprocal(maxcs_col, approx=True)
    mask = (maxcs_row < maxcs_col) & (row != col)
    cs = jnp.where(mask, cs * ratio, cs)

    # --- wv transform (exactly mirrors the numpy reference) ---
    wv = 1.0 - jnp.max(cs, axis=1, keepdims=True)             # (n, 1)
    wv = jnp.where(wv > 1.0, 1.0, wv)
    wv = jnp.where(wv < 0.0, 0.0, wv)
    wv = wv / jnp.max(wv)            # keep exact so the ==1.0 clamp fires
    wv = jnp.where(wv == 1.0, 0.99, wv)
    wv = jnp.log(wv / (1.0 - wv)) + 0.5
    # np:  wv[np.isinf(wv) + wv > 1] = 1   (precedence: (isinf + wv) > 1)
    wv = jnp.where((jnp.isinf(wv).astype(jnp.float32) + wv) > 1.0, 1.0, wv)
    wv = jnp.where(wv < 0.0, 0.0, wv)

    # --- normalize weights and aggregate: out[k] = sum_j x[j,k] * w[j] ---
    w = wv * pl.reciprocal(jnp.sum(wv, keepdims=True), approx=True)   # (n, 1)
    o_ref[...] = jnp.sum(x * w, axis=0, keepdims=True)        # (1, d) lane-dense


@jax.jit
def net_forward(inp):
    """inp: (1, d, n) float32 -> out: (d, 1) float32 (matches PyTorch Net)."""
    # Transpose left to XLA; allow_input_fusion lets it fold into the Pallas
    # input instead of a separate HBM round-trip.
    x = jnp.transpose(inp[0], (1, 0)).astype(jnp.float32)     # (n, d)
    n, d = x.shape
    out = pl.pallas_call(
        foolsgold_kernel,
        out_shape=jax.ShapeDtypeStruct((1, d), jnp.float32),
        in_specs=[pl.BlockSpec(memory_space=pltpu.MemorySpace.VMEM)],
        out_specs=pl.BlockSpec(memory_space=pltpu.MemorySpace.VMEM),
        compiler_params=pltpu.CompilerParams(allow_input_fusion=[True]),
    )(x)
    return out.reshape(d, 1)


if __name__ == "__main__":
    # Net has no learnable parameters; only the input is needed.
    d, n = 128, 8                                # vector dim, number of clients
    key = jax.random.PRNGKey(0)
    inp = jax.random.normal(key, (1, d, n), dtype=jnp.float32)

    out = net_forward(inp)
    jax.block_until_ready(out)
    assert out.shape == (d, 1)
    print("KERNEL_OK")
</pallas_src>

<mosaic_0001>
module attributes {stable_mosaic.version = 11 : i64} {
  func.func @foolsgold_kernel(%arg0: memref<8x128xf32, #tpu.memory_space<vmem>>, %arg1: memref<1x128xf32, #tpu.memory_space<vmem>>) attributes {dimension_semantics = [], scalar_prefetch = 0 : i64, scratch_operands = 0 : i64, tpu.core_type = #tpu.core_type<tc>} {
    %c0 = arith.constant 0 : index
    %c0_0 = arith.constant 0 : index
    %0 = vector.load %arg0[%c0, %c0_0] : memref<8x128xf32, #tpu.memory_space<vmem>>, vector<8x128xf32>
    %1 = arith.mulf %0, %0 : vector<8x128xf32>
    %cst = arith.constant dense<0.000000e+00> : vector<8xf32>
    %2 = vector.multi_reduction <add>, %1, %cst [1] : vector<8x128xf32> to vector<8xf32>
    %3 = vector.shape_cast %2 : vector<8xf32> to vector<8x1xf32>
    %cst_1 = arith.constant 0.000000e+00 : f32
    %4 = vector.broadcast %cst_1 : f32 to vector<8x1xf32>
    %5 = arith.cmpf ogt, %3, %4 : vector<8x1xf32>
    %6 = math.rsqrt %3 : vector<8x1xf32>
    %cst_2 = arith.constant 0.000000e+00 : f32
    %7 = vector.broadcast %cst_2 : f32 to vector<8x1xf32>
    %8 = arith.select %5, %6, %7 : vector<8x1xi1>, vector<8x1xf32>
    %9 = vector.broadcast %8 : vector<8x1xf32> to vector<8x128xf32>
    %10 = arith.mulf %0, %9 : vector<8x128xf32>
    %11 = tpu.iota {dimensions = array<i32: 0>} : vector<8x8xi32>
    %12 = tpu.iota {dimensions = array<i32: 1>} : vector<8x8xi32>
    %13 = arith.cmpi eq, %11, %12 : vector<8x8xi32>
    %14 = arith.extui %13 : vector<8x8xi1> to vector<8x8xi32>
    %15 = arith.sitofp %14 : vector<8x8xi32> to vector<8x8xf32>
    %cst_3 = arith.constant dense<0.000000e+00> : vector<8x8xf32>
    %16 = tpu.matmul %10, %10, %cst_3 {dimension_numbers = #tpu.dot_dimension_numbers<[1], [1], [0], [0], [0, 0, 1, 0], [], []>} : vector<8x128xf32>, vector<8x128xf32>, vector<8x8xf32> -> vector<8x8xf32>
    %17 = arith.subf %16, %15 : vector<8x8xf32>
    %cst_4 = arith.constant dense<0xFF800000> : vector<8xf32>
    %18 = vector.multi_reduction <maximumf>, %17, %cst_4 [1] : vector<8x8xf32> to vector<8xf32>
    %19 = vector.shape_cast %18 : vector<8xf32> to vector<8x1xf32>
    %cst_5 = arith.constant dense<0xFF800000> : vector<8xf32>
    %20 = vector.multi_reduction <maximumf>, %17, %cst_5 [0] : vector<8x8xf32> to vector<8xf32>
    %21 = vector.shape_cast %20 : vector<8xf32> to vector<1x8xf32>
    %22 = tpu.reciprocal %21 {approx = true} : vector<1x8xf32> -> vector<1x8xf32>
    %23 = vector.broadcast %19 : vector<8x1xf32> to vector<8x8xf32>
    %24 = vector.broadcast %22 : vector<1x8xf32> to vector<8x8xf32>
    %25 = arith.mulf %23, %24 : vector<8x8xf32>
    %26 = vector.broadcast %19 : vector<8x1xf32> to vector<8x8xf32>
    %27 = vector.broadcast %21 : vector<1x8xf32> to vector<8x8xf32>
    %28 = arith.cmpf olt, %26, %27 : vector<8x8xf32>
    %29 = arith.cmpi ne, %11, %12 : vector<8x8xi32>
    %30 = arith.andi %28, %29 : vector<8x8xi1>
    %31 = arith.mulf %17, %25 : vector<8x8xf32>
    %32 = arith.select %30, %31, %17 : vector<8x8xi1>, vector<8x8xf32>
    %cst_6 = arith.constant dense<0xFF800000> : vector<8xf32>
    %33 = vector.multi_reduction <maximumf>, %32, %cst_6 [1] : vector<8x8xf32> to vector<8xf32>
    %34 = vector.shape_cast %33 : vector<8xf32> to vector<8x1xf32>
    %cst_7 = arith.constant 1.000000e+00 : f32
    %35 = vector.broadcast %cst_7 : f32 to vector<8x1xf32>
    %36 = arith.subf %35, %34 : vector<8x1xf32>
    %cst_8 = arith.constant 1.000000e+00 : f32
    %37 = vector.broadcast %cst_8 : f32 to vector<8x1xf32>
    %38 = arith.cmpf ogt, %36, %37 : vector<8x1xf32>
    %cst_9 = arith.constant 1.000000e+00 : f32
    %39 = vector.broadcast %cst_9 : f32 to vector<8x1xf32>
    %40 = arith.select %38, %39, %36 : vector<8x1xi1>, vector<8x1xf32>
    %cst_10 = arith.constant 0.000000e+00 : f32
    %41 = vector.broadcast %cst_10 : f32 to vector<8x1xf32>
    %42 = arith.cmpf olt, %40, %41 : vector<8x1xf32>
    %cst_11 = arith.constant 0.000000e+00 : f32
    %43 = vector.broadcast %cst_11 : f32 to vector<8x1xf32>
    %44 = arith.select %42, %43, %40 : vector<8x1xi1>, vector<8x1xf32>
    %45 = vector.shape_cast %44 : vector<8x1xf32> to vector<1x8x1xf32>
    %cst_12 = arith.constant dense<0xFF800000> : vector<1xf32>
    %46 = vector.multi_reduction <maximumf>, %45, %cst_12 [1, 2] : vector<1x8x1xf32> to vector<1xf32>
    %47 = vector.shape_cast %46 : vector<1xf32> to vector<1x1x1xf32>
    %48 = vector.extract %47[0, 0, 0] : f32 from vector<1x1x1xf32>
    %49 = vector.broadcast %48 : f32 to vector<8x1xf32>
    %50 = arith.divf %44, %49 : vector<8x1xf32>
    %cst_13 = arith.constant 1.000000e+00 : f32
    %51 = vector.broadcast %cst_13 : f32 to vector<8x1xf32>
    %52 = arith.cmpf oeq, %50, %51 : vector<8x1xf32>
    %cst_14 = arith.constant 9.900000e-01 : f32
    %53 = vector.broadcast %cst_14 : f32 to vector<8x1xf32>
    %54 = arith.select %52, %53, %50 : vector<8x1xi1>, vector<8x1xf32>
    %cst_15 = arith.constant 1.000000e+00 : f32
    %55 = vector.broadcast %cst_15 : f32 to vector<8x1xf32>
    %56 = arith.subf %55, %54 : vector<8x1xf32>
    %57 = arith.divf %54, %56 : vector<8x1xf32>
    %58 = math.log %57 : vector<8x1xf32>
    %cst_16 = arith.constant 5.000000e-01 : f32
    %59 = vector.broadcast %cst_16 : f32 to vector<8x1xf32>
    %60 = arith.addf %58, %59 : vector<8x1xf32>
    %61 = math.absf %60 : vector<8x1xf32>
    %cst_17 = arith.constant 0x7F800000 : f32
    %62 = vector.broadcast %cst_17 : f32 to vector<8x1xf32>
    %63 = arith.cmpf oeq, %61, %62 : vector<8x1xf32>
    %64 = arith.extui %63 : vector<8x1xi1> to vector<8x1xi32>
    %65 = arith.sitofp %64 : vector<8x1xi32> to vector<8x1xf32>
    %66 = arith.addf %65, %60 : vector<8x1xf32>
    %cst_18 = arith.constant 1.000000e+00 : f32
    %67 = vector.broadcast %cst_18 : f32 to vector<8x1xf32>
    %68 = arith.cmpf ogt, %66, %67 : vector<8x1xf32>
    %cst_19 = arith.constant 1.000000e+00 : f32
    %69 = vector.broadcast %cst_19 : f32 to vector<8x1xf32>
    %70 = arith.select %68, %69, %60 : vector<8x1xi1>, vector<8x1xf32>
    %cst_20 = arith.constant 0.000000e+00 : f32
    %71 = vector.broadcast %cst_20 : f32 to vector<8x1xf32>
    %72 = arith.cmpf olt, %70, %71 : vector<8x1xf32>
    %cst_21 = arith.constant 0.000000e+00 : f32
    %73 = vector.broadcast %cst_21 : f32 to vector<8x1xf32>
    %74 = arith.select %72, %73, %70 : vector<8x1xi1>, vector<8x1xf32>
    %75 = vector.shape_cast %74 : vector<8x1xf32> to vector<1x8x1xf32>
    %cst_22 = arith.constant dense<0.000000e+00> : vector<1xf32>
    %76 = vector.multi_reduction <add>, %75, %cst_22 [1, 2] : vector<1x8x1xf32> to vector<1xf32>
    %77 = vector.shape_cast %76 : vector<1xf32> to vector<1x1x1xf32>
    %78 = vector.extract %77[0, 0, 0] : f32 from vector<1x1x1xf32>
    %79 = vector.broadcast %78 : f32 to vector<1x1xf32>
    %80 = tpu.reciprocal %79 {approx = true} : vector<1x1xf32> -> vector<1x1xf32>
    %81 = vector.broadcast %80 : vector<1x1xf32> to vector<8x1xf32>
    %82 = arith.mulf %74, %81 : vector<8x1xf32>
    %83 = vector.broadcast %82 : vector<8x1xf32> to vector<8x128xf32>
    %84 = arith.mulf %0, %83 : vector<8x128xf32>
    %cst_23 = arith.constant dense<0.000000e+00> : vector<128xf32>
    %85 = vector.multi_reduction <add>, %84, %cst_23 [0] : vector<8x128xf32> to vector<128xf32>
    %86 = vector.shape_cast %85 : vector<128xf32> to vector<1x128xf32>
    %c0_24 = arith.constant 0 : index
    %c0_25 = arith.constant 0 : index
    %87 = vector.load %arg1[%c0_24, %c0_25] : memref<1x128xf32, #tpu.memory_space<vmem>>, vector<1x128xf32>
    tpu.vector_store %arg1[%c0_24, %c0_25], %86 {strides = array<i32>} : memref<1x128xf32, #tpu.memory_space<vmem>>, vector<1x128xf32>,
    return
  }
}

</mosaic_0001>

<llo_original>
// kernel: net_forward.2
$region0: #{net_forward.2}
  #allocation0 [shape = 'u32[]', space=smem, size = 0x4, offset = 0x4, fixed_abs, tag = 'smem constant byte address 0x4 - core index']
  #allocation1 [shape = 'u32[144,128]{1,0:T(1,128)}', space=vmem, size = 0x12000, scoped, tag = 'internal scratch']
  %s0 = inlined_call_operand.vmem [shape: f32[1,128,8], index: 0, kind: input, shape index: {}]
  %s1 = inlined_call_operand.hbm [shape: f32[1,128], index: 1, kind: output, shape index: {}]
  %s2 = sld [smem:[#allocation0]]
  $region14: #{net_forward.2} parent=0
    _
  %s4 = ssub.s32 1, %s2
  %s5 = scalar_select 0, %s4, %s2
  $region1: #{net_forward.2} parent=0
    #allocation2 [shape = 'u8[512]{0}', space=vmem, size = 0x400, scoped, tag = 'output window, operand 0, single buffered']
    #allocation3 [shape = 's32[1]{0}', space=sflag, size = 0x4, scoped, tag = 'scoped memory for net_forward.2']
    #allocation4 [shape = 'u8[4096]{0}', space=vmem, size = 0x1000, dematerialized = true, scoped, tag = 'FusionAdapter Buffer %fusion.1 = f32[8,128]{1,0:T(8,128)} fusion(%param_0.1), kind=kLoop, calls=%fused_computation.1.clone, metadata={op_name="jit(net_forward)/transpose" stack_frame_id=8}']
    %6 = vsyncpa [#allocation3], 0
    // Predicated region
    $region2: #{net_forward.2} parent=1 // pred_check
      _
    $region3: #{net_forward.2} parent=1 // pred_check_branch
      %8 = sbr.rel (0) target = $region5
    $region4: #{net_forward.2} parent=1 // pred_region
      _
    $region5: #{net_forward.2} parent=1 // pred_fallthru
      _
    %v9 = vld [vmem:[%s0] sm:$0xff]
    %11 = vst [vmem:[#allocation4] sm:$0xff] %v9
    %v12 = vld [vmem:[#allocation4] sm:$0xff]
    %v13 = vmul.f32 %v12, %v12
    %14 = vadd.xlane.f32.xlu0 %v13
    %v15 = vpop.xlane.xlu0 %14
    %vm16 = vcmp.gt.f32.partialorder %v15, 0.0
    %v17 = vrsqrt.pop %v15
    %v18 = vsel %vm16, %v17, 0.0
    %v19 = vmul.f32 %v12, %v18
    %v20 = vlaneseq
    %v21 = vshrl.u32 %v20, 7
    %v22 = vlaneseq
    %v23 = vand.u32 %v22, 127
    %vm24 = vcmp.eq.s32.totalorder %v21, %v23
    %v25 = vsel %vm24, 1, 0
    %v26 = vcvt.s32.f32 %v25
    %27 = vmatprep.subr.mxu0 0.0
    %28 = vmatpush1.xpose.msra.mxu0 %v19
    %29 = vmatprep.subr.mxu0 0.0
    %30 = vmatpush1.xpose.msra.mxu0 0.0
    %31 = vmatprep.subr.mxu0 0.0
    %32 = vmatpush1.xpose.msra.mxu0 0.0
    %33 = vmatprep.subr.mxu0 0.0
    %34 = vmatpush1.xpose.msra.mxu0 0.0
    %35 = vmatprep.subr.mxu0 0.0
    %36 = vmatpush1.xpose.msra.mxu0 0.0
    %37 = vmatprep.subr.mxu0 0.0
    %38 = vmatpush1.xpose.msra.mxu0 0.0
    %39 = vmatprep.subr.mxu0 0.0
    %40 = vmatpush1.xpose.msra.mxu0 0.0
    %41 = vmatprep.subr.mxu0 0.0
    %42 = vmatpush1.xpose.msra.mxu0 0.0
    %43 = vmatprep.subr.mxu0 0.0
    %44 = vmatpush1.xpose.msra.mxu0 0.0
    %45 = vmatprep.subr.mxu0 0.0
    %46 = vmatpush1.xpose.msra.mxu0 0.0
    %47 = vmatprep.subr.mxu0 0.0
    %48 = vmatpush1.xpose.msra.mxu0 0.0
    %49 = vmatprep.subr.mxu0 0.0
    %50 = vmatpush1.xpose.msra.mxu0 0.0
    %51 = vmatprep.subr.mxu0 0.0
    %52 = vmatpush1.xpose.msra.mxu0 0.0
    %53 = vmatprep.subr.mxu0 0.0
    %54 = vmatpush1.xpose.msra.mxu0 0.0
    %55 = vmatprep.subr.mxu0 0.0
    %56 = vmatpush1.xpose.msra.mxu0 0.0
    %57 = vmatprep.subr.mxu0 0.0
    %58 = vmatpush1.xpose.msra.mxu0 0.0
    %59 = vmatprep.subr.mxu0 0.0
    %60 = vmatpush1.xpose.msra.mxu0 0.0
    %61 = vmatprep.subr.mxu0 0.0
    %62 = vmatpush1.xpose.msra.mxu0 0.0
    %63 = vmatprep.subr.mxu0 0.0
    %64 = vmatpush1.xpose.msra.mxu0 0.0
    %65 = vmatprep.subr.mxu0 0.0
    %66 = vmatpush1.xpose.msra.mxu0 0.0
    %67 = vmatprep.subr.mxu0 0.0
    %68 = vmatpush1.xpose.msra.mxu0 0.0
    %69 = vmatprep.subr.mxu0 0.0
    %70 = vmatpush1.xpose.msra.mxu0 0.0
    %71 = vmatprep.subr.mxu0 0.0
    %72 = vmatpush1.xpose.msra.mxu0 0.0
    %73 = vmatprep.subr.mxu0 0.0
    %74 = vmatpush1.xpose.msra.mxu0 0.0
    %75 = vmatprep.subr.mxu0 0.0
    %76 = vmatpush1.xpose.msra.mxu0 0.0
    %77 = vmatprep.subr.mxu0 0.0
    %78 = vmatpush1.xpose.msra.mxu0 0.0
    %79 = vmatprep.subr.mxu0 0.0
    %80 = vmatpush1.xpose.msra.mxu0 0.0
    %81 = vmatprep.subr.mxu0 0.0
    %82 = vmatpush1.xpose.msra.mxu0 0.0
    %83 = vmatprep.subr.mxu0 0.0
    %84 = vmatpush1.xpose.msra.mxu0 0.0
    %85 = vmatprep.subr.mxu0 0.0
    %86 = vmatpush1.xpose.msra.mxu0 0.0
    %87 = vmatprep.subr.mxu0 0.0
    %88 = vmatpush1.xpose.msra.mxu0 0.0
    %89 = vmatprep.subr.mxu0 0.0
    %90 = vmatpush1.xpose.msra.mxu0 0.0
    %91 = vmatprep.mubr.f32.mxu0 0.0
    %92 = vmatmul.mubr.f32.gmra.mrb[0].mxu0 %v19
    %v93 = vpop.f32.mrb[0].mxu0
    %v94 = vadd.f32 0.0, %v93
    %v95 = vpop.f32.mrb[0].mxu0
    %96 = vdwg.mxu0
    %v97 = vsub.f32 %v94, %v26
    %vm98 = vcmask 64512
    %v99 = vsel %vm98, %v97, -inf
    %100 = vmax.xlane.f32.xlu0 %v99
    %v101 = vpop.xlane.xlu0 %100
    %v102 = vrot.slane %v99, 4
    %v103 = vmax.f32 %v99, %v102
    %v104 = vrot.slane %v103, 2
    %v105 = vmax.f32 %v103, %v104
    %v106 = vrot.slane %v105, 1
    %v107 = vmax.f32 %v105, %v106
    %v108 = vrcp.pop %v107
    %v109 = vmul.f32 %v101, %v108
    %vm110 = vcmp.lt.f32.partialorder %v101, %v107
    %vm111 = vcmp.ne.s32.totalorder %v21, %v23
    %vm112 = vmand %vm110, %vm111
    %v113 = vmul.f32 %v97, %v109
    %v114 = vsel %vm112, %v113, %v97
    %v115 = vsel %vm98, %v114, -inf
    %116 = vmax.xlane.f32.xlu0 %v115
    %v117 = vpop.xlane.xlu0 %116
    %v118 = vsub.f32 1.0, %v117
    %vm119 = vcmp.gt.f32.partialorder %v118, 1.0
    %v120 = vsel %vm119, 1.0, %v118
    %vm121 = vcmp.lt.f32.partialorder %v120, 0.0
    %v122 = vsel %vm121, 0.0, %v120
    %v123 = vrot.slane %v122, 4
    %v124 = vmax.f32 %v122, %v123
    %v125 = vrot.slane %v124, 2
    %v126 = vmax.f32 %v124, %v125
    %v127 = vrot.slane %v126, 1
    %v128 = vmax.f32 %v126, %v127
    %s129 = vtos %v128
    %v130 = vstv %s129
    %v131 = vrcp.pop %v130
    %v132 = vmul.f32 %v122, %v131
    %vm133 = vcmp.eq.f32.partialorder %v132, 1.0
    %v134 = vsel %vm133, 0.99, %v132
    %v135 = vsub.f32 1.0, %v134
    %v136 = vrcp.pop %v135
    %v137 = vmul.f32 %v134, %v136
    %v138 = vlog2.pop %v137
    %v139 = vmul.f32 %v138, 0.6931472
    %v140 = vadd.f32 %v139, 0.5
    %v141 = vand.u32 2147483647, %v140
    %vm142 = vcmp.eq.f32.partialorder %v141, inf
    %v143 = vsel %vm142, 1, 0
    %v144 = vcvt.s32.f32 %v143
    %v145 = vadd.f32 %v144, %v140
    %vm146 = vcmp.gt.f32.partialorder %v145, 1.0
    %v147 = vsel %vm146, 1.0, %v140
    %vm148 = vcmp.lt.f32.partialorder %v147, 0.0
    %v149 = vsel %vm148, 0.0, %v147
    %vm150 = vcmask 7168
    %v151 = vsel %vm150, %v149, 0.0
    %152 = vadd.xlane.f32.xlu0 %v151
    %v153 = vpop.xlane.xlu0 %152
    %v154 = vrot.slane %v153, 4
    %v155 = vadd.f32 %v153, %v154
    %v156 = vrot.slane %v155, 2
    %v157 = vadd.f32 %v155, %v156
    %v158 = vrot.slane %v157, 1
    %v159 = vadd.f32 %v157, %v158
    %s160 = vtos %v159
    %v161 = vstv %s160
    %v162 = vrcp.pop %v161
    %v163 = vmul.f32 %v149, %v162
    %v164 = vmul.f32 %v12, %v163
    %v165 = vrot.slane %v164, 4
    %v166 = vadd.f32 %v164, %v165
    %v167 = vrot.slane %v166, 2
    %v168 = vadd.f32 %v166, %v167
    %v169 = vrot.slane %v168, 1
    %v170 = vadd.f32 %v168, %v169
    %171 = vst [vmem:[#allocation2] sm:$0x1] %v170
    // Predicated region
    $region6: #{net_forward.2} parent=1 // pred_check
      _
    $region7: #{net_forward.2} parent=1 // pred_check_branch
      %173 = sbr.rel (0) target = $region9
    $region8: #{net_forward.2} parent=1 // pred_region
      %s175 = ssub.s32 16, 16
      %176 = vsyncadd [#allocation3], %s175
      %s178 = sshll.u32 [#allocation2], 4
      %s179 = int_to_ptr.vmem [resolvable:$true] %s178
      %181 = dma.vmem_to_hbm [thread:$0]  %s179, 16, %s1, [#allocation3]
    $region9: #{net_forward.2} parent=1 // pred_fallthru
      _
    // Predicated region
    $region10: #{net_forward.2} parent=1 // pred_check
      _
    $region11: #{net_forward.2} parent=1 // pred_check_branch
      %183 = sbr.rel (0) target = $region13
    $region12: #{net_forward.2} parent=1 // pred_region
      %184 = dma.done [#allocation3], 16
    $region13: #{net_forward.2} parent=1 // pred_fallthru
      _
    %185 = vsyncpa [#allocation3], 1

</llo_original>
